<compile_context>
chip_gen: v7x
topology: tpu7x:2x2x1
jax: 0.10.0
libtpu: 0.0.40
codegen_flags: <defaults>
</compile_context>

<pallas_src>
import functools

import jax
import jax.numpy as jnp
from jax import lax
from jax.experimental import pallas as pl
from jax.experimental.pallas import tpu as pltpu

_LANE = 128                              # vreg lane width
_SUBLANE = 8                             # vreg sublane height
_RESIDENT_KV_BYTES = 8 * 1024 * 1024     # keep K/V fully VMEM-resident up to this
_VMEM_LIMIT = 32 * 1024 * 1024           # safe scoped-VMEM ceiling on v5e/v6e/v7x


def _round_up(n, m):
    return pl.cdiv(n, m) * m


def _tiling(seq):
    """Return (seq_p, tq, tk, tproj) -- padded length and tile sizes."""
    if seq <= 256:
        seq_p = _round_up(seq, _SUBLANE)
        # Split the q axis in two when possible so the "parallel" grid axis
        # can shard across v7x's two TensorCores.
        tq = seq_p // 2 if (seq_p % 16 == 0 and seq_p >= 16) else seq_p
        return seq_p, tq, seq_p, seq_p
    # Long sequences: big tiles keep the flash loop compute-bound and amortize
    # the ~0.35us/grid-step overhead; tk=512 fills the 256-wide v6e/v7x MXU.
    tq, tk, tproj = 256, 512, 512
    seq_p = _round_up(seq, 512)
    return seq_p, tq, tk, tproj


# -----------------------------------------------------------------------------
# Kernel 1: fused Q/K/V projection (one wide MXU matmul; K written transposed)
# -----------------------------------------------------------------------------
def _qkv_proj_kernel(x_ref, w_ref, q_ref, kt_ref, v_ref, *, d_out_p):
    # (tproj, d_in) @ (d_in, 3*d_out_p); operands in their native (bf16) dtype,
    # f32 accumulation on the MXU.
    qkv = jnp.dot(x_ref[...], w_ref[...], preferred_element_type=jnp.float32)
    q_ref[...] = qkv[:, :d_out_p].astype(q_ref.dtype)
    # Pre-transpose K once here (nproj transposes total) instead of an XLU
    # transpose in every inner attention step.
    kt_ref[...] = qkv[:, d_out_p:2 * d_out_p].T.astype(kt_ref.dtype)
    v_ref[...] = qkv[:, 2 * d_out_p:].astype(v_ref.dtype)


# -----------------------------------------------------------------------------
# Kernel 2: flash-style attention with online softmax
# -----------------------------------------------------------------------------
def _flash_attn_kernel(q_ref, kt_ref, v_ref, o_ref, m_sc, l_sc, acc_sc,
                       *, tk, seq_real, masked, kv_resident):
    ki = pl.program_id(1)

    @pl.when(ki == 0)
    def _():
        m_sc[...] = jnp.full_like(m_sc, -jnp.inf)
        l_sc[...] = jnp.zeros_like(l_sc)
        acc_sc[...] = jnp.zeros_like(acc_sc)

    if kv_resident:
        # K/V live in VMEM for the whole grid; slice the current kv tile.
        start = pl.multiple_of(ki * tk, tk)
        kt = kt_ref[:, pl.ds(start, tk)]          # (d_out_p, tk)
        v = v_ref[pl.ds(start, tk), :]            # (tk, d_out_p)
    else:
        kt = kt_ref[...]
        v = v_ref[...]

    # scores = q @ K^T as a plain NN matmul (K already transposed). The
    # softmax scale is folded into W_query, so no extra multiply here.
    s = jnp.dot(q_ref[...], kt, preferred_element_type=jnp.float32)   # (tq, tk)

    if masked:  # sequence was padded: mask out padded key columns
        col = ki * tk + lax.broadcasted_iota(jnp.int32, s.shape, 1)
        s = jnp.where(col < seq_real, s, -jnp.inf)

    m_prev = m_sc[...]
    m_new = jnp.maximum(m_prev, jnp.max(s, axis=-1, keepdims=True))
    alpha = jnp.exp(m_prev - m_new)
    p = jnp.exp(s - m_new)
    l_sc[...] = alpha * l_sc[...] + jnp.sum(p, axis=-1, keepdims=True)
    acc_sc[...] = alpha * acc_sc[...] + jnp.dot(
        p.astype(v.dtype), v, preferred_element_type=jnp.float32)
    m_sc[...] = m_new

    @pl.when(ki == pl.num_programs(1) - 1)
    def _():
        inv_l = pl.reciprocal(l_sc[...], approx=True)   # EUP vrcp, ~free slot
        o_ref[...] = (acc_sc[...] * inv_l).astype(o_ref.dtype)


# -----------------------------------------------------------------------------
# Wrapper
# -----------------------------------------------------------------------------
def self_attention_v2(x, w_query, w_key, w_value, *, compute_dtype=jnp.bfloat16):
    """x: (seq, d_in); w_*: (d_in, d_out) [= PyTorch nn.Linear weight .T]."""
    seq, d_in = x.shape
    d_out = w_query.shape[1]
    out_dtype = x.dtype
    d_out_p = _round_up(d_out, _LANE)
    itemsize = jnp.dtype(compute_dtype).itemsize

    # Fold the 1/sqrt(d_out) softmax scale into the query projection weights.
    scale = 1.0 / (d_out ** 0.5)
    pad_c = ((0, 0), (0, d_out_p - d_out))
    w_qkv = jnp.concatenate(
        [jnp.pad(w_query * scale, pad_c),
         jnp.pad(w_key, pad_c),
         jnp.pad(w_value, pad_c)], axis=1).astype(compute_dtype)   # (d_in, 3*d_out_p)

    seq_p, tq, tk, tproj = _tiling(seq)
    if seq_p != seq:
        x = jnp.pad(x, ((0, seq_p - seq), (0, 0)))
    x_c = x.astype(compute_dtype)

    # ---- Kernel 1: fused QKV projection -------------------------------------
    nproj = seq_p // tproj
    q, kt, v = pl.pallas_call(
        functools.partial(_qkv_proj_kernel, d_out_p=d_out_p),
        out_shape=(jax.ShapeDtypeStruct((seq_p, d_out_p), compute_dtype),
                   jax.ShapeDtypeStruct((d_out_p, seq_p), compute_dtype),
                   jax.ShapeDtypeStruct((seq_p, d_out_p), compute_dtype)),
        grid=(nproj,),
        in_specs=[
            pl.BlockSpec((tproj, d_in), lambda i: (i, 0)),
            pl.BlockSpec((d_in, 3 * d_out_p), lambda i: (0, 0)),
        ],
        out_specs=(
            pl.BlockSpec((tproj, d_out_p), lambda i: (i, 0)),
            pl.BlockSpec((d_out_p, tproj), lambda i: (0, i)),
            pl.BlockSpec((tproj, d_out_p), lambda i: (i, 0)),
        ),
        compiler_params=pltpu.CompilerParams(
            dimension_semantics=("parallel",),
            vmem_limit_bytes=_VMEM_LIMIT),
        cost_estimate=pl.CostEstimate(
            flops=2 * seq_p * d_in * 3 * d_out_p,
            transcendentals=0,
            bytes_accessed=(seq_p * d_in + d_in * 3 * d_out_p
                            + 3 * seq_p * d_out_p) * itemsize),
    )(x_c, w_qkv)

    # ---- Kernel 2: flash attention -------------------------------------------
    nq, nk = seq_p // tq, seq_p // tk
    kv_bytes = 2 * seq_p * d_out_p * itemsize
    kv_resident = kv_bytes <= _RESIDENT_KV_BYTES

    if kv_resident:
        # Constant index_map -> K/V DMA'd once and held in VMEM; no nq-fold
        # HBM re-streaming.
        kt_spec = pl.BlockSpec((d_out_p, seq_p), lambda qi, ki: (0, 0))
        v_spec = pl.BlockSpec((seq_p, d_out_p), lambda qi, ki: (0, 0))
        kv_read_bytes = kv_bytes
    else:
        kt_spec = pl.BlockSpec((d_out_p, tk), lambda qi, ki: (0, ki))
        v_spec = pl.BlockSpec((tk, d_out_p), lambda qi, ki: (ki, 0))
        kv_read_bytes = nq * kv_bytes

    ctx_p = pl.pallas_call(
        functools.partial(_flash_attn_kernel, tk=tk, seq_real=seq,
                          masked=(seq_p != seq), kv_resident=kv_resident),
        out_shape=jax.ShapeDtypeStruct((seq_p, d_out_p), out_dtype),
        grid=(nq, nk),
        in_specs=[pl.BlockSpec((tq, d_out_p), lambda qi, ki: (qi, 0)),
                  kt_spec, v_spec],
        out_specs=pl.BlockSpec((tq, d_out_p), lambda qi, ki: (qi, 0)),
        scratch_shapes=[
            pltpu.VMEM((tq, 1), jnp.float32),        # running max m
            pltpu.VMEM((tq, 1), jnp.float32),        # running denom l
            pltpu.VMEM((tq, d_out_p), jnp.float32),  # output accumulator
        ],
        compiler_params=pltpu.CompilerParams(
            dimension_semantics=("parallel", "arbitrary"),
            vmem_limit_bytes=_VMEM_LIMIT),
        cost_estimate=pl.CostEstimate(
            flops=4 * seq_p * seq_p * d_out_p,
            transcendentals=seq_p * seq_p,
            bytes_accessed=(seq_p * d_out_p * itemsize + kv_read_bytes
                            + seq_p * d_out_p * jnp.dtype(out_dtype).itemsize)),
    )(q, kt, v)

    # Drop padded rows and zero-padded lanes (cheap XLA slice outside kernel).
    return ctx_p[:seq, :d_out]


def reference(x, w_query, w_key, w_value):
    q = x @ w_query
    k = x @ w_key
    v = x @ w_value
    scores = q @ k.T / (k.shape[-1] ** 0.5)
    w = jax.nn.softmax(scores, axis=-1)
    return w @ v


if __name__ == "__main__":
    seq, d_in, d_out = 8, 32, 16

    key = jax.random.PRNGKey(0)
    kx, kq, kk, kv = jax.random.split(key, 4)
    x = jax.random.normal(kx, (seq, d_in), dtype=jnp.float32)
    # Deterministic Kaiming-uniform-like init (weights stored as (d_in, d_out)).
    bound = 1.0 / (d_in ** 0.5)
    w_query = jax.random.uniform(kq, (d_in, d_out), jnp.float32, -bound, bound)
    w_key = jax.random.uniform(kk, (d_in, d_out), jnp.float32, -bound, bound)
    w_value = jax.random.uniform(kv, (d_in, d_out), jnp.float32, -bound, bound)

    ref = reference(x, w_query, w_key, w_value)

    # Default (performance) path: bf16 MXU operands, f32 accumulation.
    out = jax.block_until_ready(self_attention_v2(x, w_query, w_key, w_value))
    assert out.shape == (seq, d_out)
    assert jnp.allclose(out, ref, atol=5e-2, rtol=5e-2), \
        float(jnp.max(jnp.abs(out - ref)))

    # f32 compute path: near-exact (only approx-reciprocal error).
    out32 = jax.block_until_ready(
        self_attention_v2(x, w_query, w_key, w_value, compute_dtype=jnp.float32))
    assert jnp.allclose(out32, ref, atol=2e-3, rtol=2e-3), \
        float(jnp.max(jnp.abs(out32 - ref)))

    # Non-multiple-of-8 sequence exercises the pad + key-mask path.
    seq2 = 12
    x2 = jax.random.normal(jax.random.PRNGKey(1), (seq2, d_in), jnp.float32)
    out2 = jax.block_until_ready(
        self_attention_v2(x2, w_query, w_key, w_value, compute_dtype=jnp.float32))
    ref2 = reference(x2, w_query, w_key, w_value)
    assert out2.shape == (seq2, d_out)
    assert jnp.allclose(out2, ref2, atol=2e-3, rtol=2e-3), \
        float(jnp.max(jnp.abs(out2 - ref2)))

    print("KERNEL_OK")
</pallas_src>

<mosaic_0001>
module attributes {stable_mosaic.version = 11 : i64} {
  func.func @_qkv_proj_kernel(%arg0: i32, %arg1: memref<8x32xbf16, #tpu.memory_space<vmem>>, %arg2: memref<32x384xbf16, #tpu.memory_space<vmem>>, %arg3: memref<8x128xbf16, #tpu.memory_space<vmem>>, %arg4: memref<128x8xbf16, #tpu.memory_space<vmem>>, %arg5: memref<8x128xbf16, #tpu.memory_space<vmem>>) attributes {dimension_semantics = [#tpu.dimension_semantics<parallel>], iteration_bounds = array<i64: 1>, scalar_prefetch = 0 : i64, scratch_operands = 0 : i64, tpu.core_type = #tpu.core_type<tc>, window_params = [{transform_indices = @transform_0, window_bounds = array<i64: 8, 32>}, {pipeline_mode = #tpu.pipeline_mode<synchronous>, transform_indices = @transform_1, window_bounds = array<i64: 32, 384>}, {transform_indices = @transform_2, window_bounds = array<i64: 8, 128>}, {transform_indices = @transform_3, window_bounds = array<i64: 128, 8>}, {transform_indices = @transform_4, window_bounds = array<i64: 8, 128>}]} {
    %c0 = arith.constant 0 : index
    %c0_0 = arith.constant 0 : index
    %0 = vector.load %arg1[%c0, %c0_0] : memref<8x32xbf16, #tpu.memory_space<vmem>>, vector<8x32xbf16>
    %c0_1 = arith.constant 0 : index
    %c0_2 = arith.constant 0 : index
    %1 = vector.load %arg2[%c0_1, %c0_2] : memref<32x384xbf16, #tpu.memory_space<vmem>>, vector<32x384xbf16>
    %cst = arith.constant dense<0.000000e+00> : vector<8x384xf32>
    %2 = tpu.matmul %0, %1, %cst {dimension_numbers = #tpu.dot_dimension_numbers<[1], [0], [0], [1], [0, 0, 1, 1], [], []>} : vector<8x32xbf16>, vector<32x384xbf16>, vector<8x384xf32> -> vector<8x384xf32>
    %3 = vector.extract_strided_slice %2 {offsets = [0, 0], sizes = [8, 128], strides = [1, 1]} : vector<8x384xf32> to vector<8x128xf32>
    %4 = arith.truncf %3 : vector<8x128xf32> to vector<8x128xbf16>
    %c0_3 = arith.constant 0 : index
    %c0_4 = arith.constant 0 : index
    %5 = vector.load %arg3[%c0_3, %c0_4] : memref<8x128xbf16, #tpu.memory_space<vmem>>, vector<8x128xbf16>
    tpu.vector_store %arg3[%c0_3, %c0_4], %4 {strides = array<i32>} : memref<8x128xbf16, #tpu.memory_space<vmem>>, vector<8x128xbf16>,
    %6 = vector.extract_strided_slice %2 {offsets = [0, 128], sizes = [8, 128], strides = [1, 1]} : vector<8x384xf32> to vector<8x128xf32>
    %7 = tpu.transpose %6, [1, 0] : vector<8x128xf32> -> vector<128x8xf32>
    %8 = arith.truncf %7 : vector<128x8xf32> to vector<128x8xbf16>
    %c0_5 = arith.constant 0 : index
    %c0_6 = arith.constant 0 : index
    %9 = vector.load %arg4[%c0_5, %c0_6] : memref<128x8xbf16, #tpu.memory_space<vmem>>, vector<128x8xbf16>
    tpu.vector_store %arg4[%c0_5, %c0_6], %8 {strides = array<i32>} : memref<128x8xbf16, #tpu.memory_space<vmem>>, vector<128x8xbf16>,
    %10 = vector.extract_strided_slice %2 {offsets = [0, 256], sizes = [8, 128], strides = [1, 1]} : vector<8x384xf32> to vector<8x128xf32>
    %11 = arith.truncf %10 : vector<8x128xf32> to vector<8x128xbf16>
    %c0_7 = arith.constant 0 : index
    %c0_8 = arith.constant 0 : index
    %12 = vector.load %arg5[%c0_7, %c0_8] : memref<8x128xbf16, #tpu.memory_space<vmem>>, vector<8x128xbf16>
    tpu.vector_store %arg5[%c0_7, %c0_8], %11 {strides = array<i32>} : memref<8x128xbf16, #tpu.memory_space<vmem>>, vector<8x128xbf16>,
    return
  }
  func.func @transform_0(%arg0: i32) -> (i32, i32) {
    %c0_i32 = arith.constant 0 : i32
    %c0_i32_0 = arith.constant 0 : i32
    return %arg0, %c0_i32 : i32, i32
  }
  func.func @transform_1(%arg0: i32) -> (i32, i32) {
    %c0_i32 = arith.constant 0 : i32
    %c0_i32_0 = arith.constant 0 : i32
    %c0_i32_1 = arith.constant 0 : i32
    return %c0_i32, %c0_i32_0 : i32, i32
  }
  func.func @transform_2(%arg0: i32) -> (i32, i32) {
    %c0_i32 = arith.constant 0 : i32
    %c0_i32_0 = arith.constant 0 : i32
    return %arg0, %c0_i32 : i32, i32
  }
  func.func @transform_3(%arg0: i32) -> (i32, i32) {
    %c0_i32 = arith.constant 0 : i32
    %c0_i32_0 = arith.constant 0 : i32
    return %c0_i32, %arg0 : i32, i32
  }
  func.func @transform_4(%arg0: i32) -> (i32, i32) {
    %c0_i32 = arith.constant 0 : i32
    %c0_i32_0 = arith.constant 0 : i32
    return %arg0, %c0_i32 : i32, i32
  }
}

</mosaic_0001>

<llo_original>
// kernel: tpu_custom_call.1
$region0: #{tpu_custom_call.1}
  #allocation0 [shape = 'u32[]', space=smem, size = 0x4, offset = 0x4, fixed_abs, tag = 'smem constant byte address 0x4 - core index']
  #allocation1 [shape = 'u32[144,128]{1,0:T(1,128)}', space=vmem, size = 0x12000, scoped, tag = 'internal scratch']
  %s0 = inlined_call_operand.hbm [shape: bf16[8,32], index: 0, kind: input, shape index: {}]
  %s1 = inlined_call_operand.hbm [shape: bf16[32,384], index: 1, kind: input, shape index: {}]
  %s2 = inlined_call_operand.hbm [shape: bf16[8,128], index: 2, kind: output, shape index: {0}]
  %s3 = inlined_call_operand.vmem [shape: bf16[128,8], index: 3, kind: output, shape index: {1}]
  %s4 = inlined_call_operand.hbm [shape: bf16[8,128], index: 4, kind: output, shape index: {2}]
  %5 = xla_tuple %s2, %s3, %s4
  %s6 = sld [smem:[#allocation0]]
  $region42: #{tpu_custom_call.1} parent=0
    _
  %s8 = ssub.s32 1, %s6
  %s9 = scalar_select 0, %s8, %s6
  $region1: #{tpu_custom_call.1} parent=0
    #allocation2 [shape = 'u8[2048]{0}', space=vmem, size = 0x800, scoped, tag = 'input window, operand 0, single buffered']
    #allocation3 [shape = 's32[1]{0}', space=sflag, size = 0x4, scoped, tag = 'scoped memory for tpu_custom_call.1']
    #allocation4 [shape = 's32[1]{0}', space=sflag, size = 0x4, scoped, tag = 'scoped memory for tpu_custom_call.1']
    #allocation5 [shape = 'u8[24576]{0}', space=vmem, size = 0x6000, scoped, tag = 'input window, operand 1, single buffered']
    #allocation6 [shape = 's32[1]{0}', space=sflag, size = 0x4, scoped, tag = 'scoped memory for tpu_custom_call.1']
    #allocation7 [shape = 'u8[2048]{0}', space=vmem, size = 0x800, scoped, tag = 'output window, operand 0, single buffered']
    #allocation8 [shape = 'u8[2048]{0}', space=vmem, size = 0x800, scoped, tag = 'output window, operand 2, single buffered']
    #allocation9 [shape = 's32[1]{0}', space=sflag, size = 0x4, scoped, tag = 'scoped memory for tpu_custom_call.1']
    %10 = vsyncpa [#allocation3], 0
    %11 = vsyncpa [#allocation6], 0
    %12 = vsyncpa [#allocation4], 0
    %13 = vsyncpa [#allocation9], 0
    // Predicated region
    $region2: #{tpu_custom_call.1} parent=1 // pred_check
      _
    $region3: #{tpu_custom_call.1} parent=1 // pred_check_branch
      %15 = sbr.rel (0) target = $region5
    $region4: #{tpu_custom_call.1} parent=1 // pred_region
      %s17 = ssub.s32 64, 64
      %18 = vsyncadd [#allocation3], %s17
      %s20 = sshll.u32 [#allocation2], 4
      %s21 = int_to_ptr.vmem [resolvable:$true] %s20
      %23 = dma.hbm_to_vmem [thread:$0]  %s0, 64, %s21, [#allocation3]
    $region5: #{tpu_custom_call.1} parent=1 // pred_fallthru
      _
    // Predicated region
    $region6: #{tpu_custom_call.1} parent=1 // pred_check
      _
    $region7: #{tpu_custom_call.1} parent=1 // pred_check_branch
      %25 = sbr.rel (0) target = $region9
    $region8: #{tpu_custom_call.1} parent=1 // pred_region
      %s27 = ssub.s32 768, 768
      %28 = vsyncadd [#allocation6], %s27
      %s29 = sshll.u32 [#allocation5], 4
      %s30 = int_to_ptr.vmem [resolvable:$true] %s29
      %35 = dma.hbm_to_vmem [thread:$0]  %s1, 768, %s30, [#allocation6], 192, 192, 12
    $region9: #{tpu_custom_call.1} parent=1 // pred_fallthru
      _
    // Predicated region
    $region10: #{tpu_custom_call.1} parent=1 // pred_check
      _
    $region11: #{tpu_custom_call.1} parent=1 // pred_check_branch
      %37 = sbr.rel (0) target = $region13
    $region12: #{tpu_custom_call.1} parent=1 // pred_region
      %38 = dma.done [#allocation3], 64
    $region13: #{tpu_custom_call.1} parent=1 // pred_fallthru
      _
    // Predicated region
    $region14: #{tpu_custom_call.1} parent=1 // pred_check
      _
    $region15: #{tpu_custom_call.1} parent=1 // pred_check_branch
      %40 = sbr.rel (0) target = $region17
    $region16: #{tpu_custom_call.1} parent=1 // pred_region
      %41 = dma.done [#allocation6], 768
    $region17: #{tpu_custom_call.1} parent=1 // pred_fallthru
      _
    %v43 = vld [vmem:[#allocation2] sm:$0xf]
    %v44 = vld [vmem:[#allocation5] sm:$0xff]
    %v45 = vld [vmem:[#allocation5 + $0x8] sm:$0xf]
    %v46 = vld [vmem:[#allocation5 + $0xc] sm:$0xff]
    %v47 = vld [vmem:[#allocation5 + $0x14] sm:$0xf]
    %v48 = vld [vmem:[#allocation5 + $0x18] sm:$0xff]
    %v49 = vld [vmem:[#allocation5 + $0x20] sm:$0xf]
    %v50 = vld [vmem:[#allocation5 + $0x24] sm:$0xff]
    %v51 = vld [vmem:[#allocation5 + $0x2c] sm:$0xf]
    %v60 = vunpack.c.l.b16 %v44
    %v61 = vunpack.c.h.b16 %v44
    %v62 = vunpack.c.l.b16 %v45
    %v63 = vunpack.c.l.b16 %v46
    %v64 = vunpack.c.h.b16 %v46
    %v65 = vunpack.c.l.b16 %v47
    %v66 = vunpack.c.l.b16 %v48
    %v67 = vunpack.c.h.b16 %v48
    %v68 = vunpack.c.l.b16 %v49
    %v69 = vunpack.c.l.b16 %v50
    %v70 = vunpack.c.h.b16 %v50
    %v71 = vunpack.c.l.b16 %v51
    %v72 = vpack.c.b16 %v63, %v60
    %v73 = vpack.c.b16 %v64, %v61
    %v74 = vpack.c.b16 %v65, %v62
    %v75 = vpack.c.b16 %v69, %v66
    %v76 = vpack.c.b16 %v70, %v67
    %v77 = vpack.c.b16 %v71, %v68
    %vm84 = vcmask 261120
    %v86 = vsel %vm84, %v43, 0
    %88 = vmatprep.subr.bf16.mxu0 %v73
    %89 = vmatpush1.bf16.msra.mxu0 %v72
    %90 = vmatprep.subr.bf16.mxu0 %v76
    %91 = vmatpush1.bf16.msra.mxu0 %v75
    %92 = vmatprep.subr.bf16.mxu0 0
    %93 = vmatpush1.bf16.msra.mxu0 0
    %94 = vmatprep.subr.bf16.mxu0 0
    %95 = vmatpush1.bf16.msra.mxu0 0
    %96 = vmatprep.subr.bf16.mxu0 0
    %97 = vmatpush1.bf16.msra.mxu0 0
    %98 = vmatprep.subr.bf16.mxu0 0
    %99 = vmatpush1.bf16.msra.mxu0 0
    %100 = vmatprep.subr.bf16.mxu0 0
    %101 = vmatpush1.bf16.msra.mxu0 0
    %102 = vmatprep.subr.bf16.mxu0 0
    %103 = vmatpush1.bf16.msra.mxu0 0
    %104 = vmatprep.subr.bf16.mxu0 0
    %105 = vmatpush1.bf16.msra.mxu0 0
    %106 = vmatprep.subr.bf16.mxu0 0
    %107 = vmatpush1.bf16.msra.mxu0 0
    %108 = vmatprep.subr.bf16.mxu0 0
    %109 = vmatpush1.bf16.msra.mxu0 0
    %110 = vmatprep.subr.bf16.mxu0 0
    %111 = vmatpush1.bf16.msra.mxu0 0
    %112 = vmatprep.subr.bf16.mxu0 0
    %113 = vmatpush1.bf16.msra.mxu0 0
    %114 = vmatprep.subr.bf16.mxu0 0
    %115 = vmatpush1.bf16.msra.mxu0 0
    %116 = vmatprep.subr.bf16.mxu0 0
    %117 = vmatpush1.bf16.msra.mxu0 0
    %118 = vmatprep.subr.bf16.mxu0 0
    %119 = vmatpush1.bf16.msra.mxu0 0
    %120 = vmatprep.mubr.bf16.mxu0 0
    %121 = vmatmul.mubr.bf16.gmra.mrb[0].mxu0 %v86
    %v122 = vpop.f32.mrb[0].mxu0
    %v123 = vadd.f32 0.0, %v122
    %v124 = vpop.f32.mrb[0].mxu0
    %v125 = vadd.f32 0.0, %v124
    %v126 = vpop.f32.mrb[0].mxu0
    %v127 = vpop.f32.mrb[0].mxu0
    %128 = vdwg.mxu0
    %129 = vmatprep.subr.bf16.mxu0 0
    %130 = vmatpush1.bf16.msra.mxu0 %v74
    %131 = vmatprep.subr.bf16.mxu0 0
    %132 = vmatpush1.bf16.msra.mxu0 %v77
    %133 = vmatprep.subr.bf16.mxu0 0
    %134 = vmatpush1.bf16.msra.mxu0 0
    %135 = vmatprep.subr.bf16.mxu0 0
    %136 = vmatpush1.bf16.msra.mxu0 0
    %137 = vmatprep.subr.bf16.mxu0 0
    %138 = vmatpush1.bf16.msra.mxu0 0
    %139 = vmatprep.subr.bf16.mxu0 0
    %140 = vmatpush1.bf16.msra.mxu0 0
    %141 = vmatprep.subr.bf16.mxu0 0
    %142 = vmatpush1.bf16.msra.mxu0 0
    %143 = vmatprep.subr.bf16.mxu0 0
    %144 = vmatpush1.bf16.msra.mxu0 0
    %145 = vmatprep.subr.bf16.mxu0 0
    %146 = vmatpush1.bf16.msra.mxu0 0
    %147 = vmatprep.subr.bf16.mxu0 0
    %148 = vmatpush1.bf16.msra.mxu0 0
    %149 = vmatprep.subr.bf16.mxu0 0
    %150 = vmatpush1.bf16.msra.mxu0 0
    %151 = vmatprep.subr.bf16.mxu0 0
    %152 = vmatpush1.bf16.msra.mxu0 0
    %153 = vmatprep.subr.bf16.mxu0 0
    %154 = vmatpush1.bf16.msra.mxu0 0
    %155 = vmatprep.subr.bf16.mxu0 0
    %156 = vmatpush1.bf16.msra.mxu0 0
    %157 = vmatprep.subr.bf16.mxu0 0
    %158 = vmatpush1.bf16.msra.mxu0 0
    %159 = vmatprep.subr.bf16.mxu0 0
    %160 = vmatpush1.bf16.msra.mxu0 0
    %161 = vmatprep.mubr.bf16.mxu0 0
    %162 = vmatmul.mubr.bf16.gmra.mrb[0].mxu0 %v86
    %v163 = vpop.f32.mrb[0].mxu0
    %v164 = vadd.f32 0.0, %v163
    %v165 = vpop.f32.mrb[0].mxu0
    %v166 = vpop.f32.mrb[0].mxu0
    %v167 = vpop.f32.mrb[0].mxu0
    %168 = vdwg.mxu0
    %v169 = vpack.c.bf16 %v123, %v123
    %170 = vst [vmem:[#allocation7] sm:$0xf] %v169
    %171 = vxpose.xlu0.b32.start [1/16] %v125, 128
    %172 = vxpose.xlu0.b32.cont [2/16] 0.0, 128
    %173 = vxpose.xlu0.b32.cont [3/16] 0.0, 128
    %174 = vxpose.xlu0.b32.cont [4/16] 0.0, 128
    %175 = vxpose.xlu0.b32.cont [5/16] 0.0, 128
    %176 = vxpose.xlu0.b32.cont [6/16] 0.0, 128
    %177 = vxpose.xlu0.b32.cont [7/16] 0.0, 128
    %178 = vxpose.xlu0.b32.cont [8/16] 0.0, 128
    %179 = vxpose.xlu0.b32.cont [9/16] 0.0, 128
    %180 = vxpose.xlu0.b32.cont [10/16] 0.0, 128
    %181 = vxpose.xlu0.b32.cont [11/16] 0.0, 128
    %182 = vxpose.xlu0.b32.cont [12/16] 0.0, 128
    %183 = vxpose.xlu0.b32.cont [13/16] 0.0, 128
    %184 = vxpose.xlu0.b32.cont [14/16] 0.0, 128
    %185 = vxpose.xlu0.b32.cont [15/16] 0.0, 128
    %186 = vxpose.xlu0.b32.end [16/16] 0.0, 128
    %v187 = vpop.trf.xlu0
    %v188 = vpop.trf.xlu0
    %v189 = vpop.trf.xlu0
    %v190 = vpop.trf.xlu0
    %v191 = vpop.trf.xlu0
    %v192 = vpop.trf.xlu0
    %v193 = vpop.trf.xlu0
    %v194 = vpop.trf.xlu0
    %v195 = vpop.trf.xlu0
    %v196 = vpop.trf.xlu0
    %v197 = vpop.trf.xlu0
    %v198 = vpop.trf.xlu0
    %v199 = vpop.trf.xlu0
    %v200 = vpop.trf.xlu0
    %v201 = vpop.trf.xlu0
    %v202 = vpop.trf.xlu0
    %v203 = vpack.c.bf16 %v188, %v187
    %v204 = vpack.c.bf16 %v190, %v189
    %v205 = vpack.c.bf16 %v192, %v191
    %v206 = vpack.c.bf16 %v194, %v193
    %v207 = vpack.c.bf16 %v196, %v195
    %v208 = vpack.c.bf16 %v198, %v197
    %v209 = vpack.c.bf16 %v200, %v199
    %v210 = vpack.c.bf16 %v202, %v201
    %v219 = vunpack.c.l.b16 %v203
    %v220 = vunpack.c.h.b16 %v203
    %v221 = vunpack.c.l.b16 %v204
    %v222 = vunpack.c.h.b16 %v204
    %v223 = vunpack.c.l.b16 %v205
    %v224 = vunpack.c.h.b16 %v205
    %v225 = vunpack.c.l.b16 %v206
    %v226 = vunpack.c.h.b16 %v206
    %v227 = vunpack.c.l.b16 %v207
    %v228 = vunpack.c.h.b16 %v207
    %v229 = vunpack.c.l.b16 %v208
    %v230 = vunpack.c.h.b16 %v208
    %v231 = vunpack.c.l.b16 %v209
    %v232 = vunpack.c.h.b16 %v209
    %v233 = vunpack.c.l.b16 %v210
    %v234 = vunpack.c.h.b16 %v210
    %v235 = vpack.c.b16 %v219, %v219
    %v236 = vpack.c.b16 %v220, %v220
    %v237 = vpack.c.b16 %v221, %v221
    %v238 = vpack.c.b16 %v222, %v222
    %v239 = vpack.c.b16 %v223, %v223
    %v240 = vpack.c.b16 %v224, %v224
    %v241 = vpack.c.b16 %v225, %v225
    %v242 = vpack.c.b16 %v226, %v226
    %v243 = vpack.c.b16 %v227, %v227
    %v244 = vpack.c.b16 %v228, %v228
    %v245 = vpack.c.b16 %v229, %v229
    %v246 = vpack.c.b16 %v230, %v230
    %v247 = vpack.c.b16 %v231, %v231
    %v248 = vpack.c.b16 %v232, %v232
    %v249 = vpack.c.b16 %v233, %v233
    %v250 = vpack.c.b16 %v234, %v234
    %vm267 = vcmask 60416
    %268 = vst.msk [vmem:[%s3] sm:$0xf] %vm267, %v235
    %269 = vst.msk [vmem:[%s3 + $0x4] sm:$0xf] %vm267, %v236
    %270 = vst.msk [vmem:[%s3 + $0x8] sm:$0xf] %vm267, %v237
    %271 = vst.msk [vmem:[%s3 + $0xc] sm:$0xf] %vm267, %v238
    %272 = vst.msk [vmem:[%s3 + $0x10] sm:$0xf] %vm267, %v239
    %273 = vst.msk [vmem:[%s3 + $0x14] sm:$0xf] %vm267, %v240
    %274 = vst.msk [vmem:[%s3 + $0x18] sm:$0xf] %vm267, %v241
    %275 = vst.msk [vmem:[%s3 + $0x1c] sm:$0xf] %vm267, %v242
    %276 = vst.msk [vmem:[%s3 + $0x20] sm:$0xf] %vm267, %v243
    %277 = vst.msk [vmem:[%s3 + $0x24] sm:$0xf] %vm267, %v244
    %278 = vst.msk [vmem:[%s3 + $0x28] sm:$0xf] %vm267, %v245
    %279 = vst.msk [vmem:[%s3 + $0x2c] sm:$0xf] %vm267, %v246
    %280 = vst.msk [vmem:[%s3 + $0x30] sm:$0xf] %vm267, %v247
    %281 = vst.msk [vmem:[%s3 + $0x34] sm:$0xf] %vm267, %v248
    %282 = vst.msk [vmem:[%s3 + $0x38] sm:$0xf] %vm267, %v249
    %283 = vst.msk [vmem:[%s3 + $0x3c] sm:$0xf] %vm267, %v250
    %v284 = vpack.c.bf16 %v164, %v164
    %285 = vst [vmem:[#allocation8] sm:$0xf] %v284
    // Predicated region
    $region18: #{tpu_custom_call.1} parent=1 // pred_check
      _
    $region19: #{tpu_custom_call.1} parent=1 // pred_check_branch
      %287 = sbr.rel (0) target = $region21
    $region20: #{tpu_custom_call.1} parent=1 // pred_region
      %s289 = ssub.s32 64, 64
      %290 = vsyncadd [#allocation4], %s289
      %s292 = sshll.u32 [#allocation7], 4
      %s293 = int_to_ptr.vmem [resolvable:$true] %s292
      %295 = dma.vmem_to_hbm [thread:$0]  %s293, 64, %s2, [#allocation4]
    $region21: #{tpu_custom_call.1} parent=1 // pred_fallthru
      _
    // Predicated region
    $region22: #{tpu_custom_call.1} parent=1 // pred_check
      _
    $region23: #{tpu_custom_call.1} parent=1 // pred_check_branch
      %297 = sbr.rel (0) target = $region25
    $region24: #{tpu_custom_call.1} parent=1 // pred_region
      _
    $region25: #{tpu_custom_call.1} parent=1 // pred_fallthru
      _
    // Predicated region
    $region26: #{tpu_custom_call.1} parent=1 // pred_check
      _
    $region27: #{tpu_custom_call.1} parent=1 // pred_check_branch
      %299 = sbr.rel (0) target = $region29
    $region28: #{tpu_custom_call.1} parent=1 // pred_region
      %s301 = ssub.s32 64, 64
      %302 = vsyncadd [#allocation9], %s301
      %s304 = sshll.u32 [#allocation8], 4
      %s305 = int_to_ptr.vmem [resolvable:$true] %s304
      %307 = dma.vmem_to_hbm [thread:$0]  %s305, 64, %s4, [#allocation9]
    $region29: #{tpu_custom_call.1} parent=1 // pred_fallthru
      _
    // Predicated region
    $region30: #{tpu_custom_call.1} parent=1 // pred_check
      _
    $region31: #{tpu_custom_call.1} parent=1 // pred_check_branch
      %309 = sbr.rel (0) target = $region33
    $region32: #{tpu_custom_call.1} parent=1 // pred_region
      %310 = dma.done [#allocation4], 64
    $region33: #{tpu_custom_call.1} parent=1 // pred_fallthru
      _
    // Predicated region
    $region34: #{tpu_custom_call.1} parent=1 // pred_check
      _
    $region35: #{tpu_custom_call.1} parent=1 // pred_check_branch
      %312 = sbr.rel (0) target = $region37
    $region36: #{tpu_custom_call.1} parent=1 // pred_region
      _
    $region37: #{tpu_custom_call.1} parent=1 // pred_fallthru
      _
    // Predicated region
    $region38: #{tpu_custom_call.1} parent=1 // pred_check
      _
    $region39: #{tpu_custom_call.1} parent=1 // pred_check_branch
      %314 = sbr.rel (0) target = $region41
    $region40: #{tpu_custom_call.1} parent=1 // pred_region
      %315 = dma.done [#allocation9], 64
    $region41: #{tpu_custom_call.1} parent=1 // pred_fallthru
      _
    %316 = vsyncpa [#allocation3], 1
    %317 = vsyncpa [#allocation6], 1
    %318 = vsyncpa [#allocation4], 1
    %319 = vsyncpa [#allocation9], 1

</llo_original>
